<compile_context>
chip_gen: v6e
topology: v6e:2x2x1
jax: 0.10.0
libtpu: 0.0.40
codegen_flags: <defaults>
</compile_context>

<pallas_src>
import functools

import jax
import jax.numpy as jnp
from jax.experimental import pallas as pl
from jax.experimental.pallas import tpu as pltpu


def _round_up(x, m):
    return (x + m - 1) // m * m


def _nbytes(shape, dtype):
    n = 1
    for s in shape:
        n *= int(s)
    return n * jnp.dtype(dtype).itemsize


def _forward_model_kernel(a_ref, s_ref, w1a_ref, w1b_ref, b1_ref,
                          w2_ref, b2_ref, w3_ref, b3_ref, out_ref):
    # a_ref:  [TB, 128] f32   (action latent)        -> cast to bf16 in-kernel
    # s_ref:  [TB, F  ] f32   (state latent)         -> cast to bf16 in-kernel
    # w1a:    [128,128] bf16  w1b: [F,128] bf16
    # w2:     [128,128] bf16  w3:  [128,F] bf16
    # biases: f32
    a = a_ref[...].astype(jnp.bfloat16)
    s = s_ref[...].astype(jnp.bfloat16)

    # Fused concat: h1 = [a, s] @ w1 + b1  ==  a @ w1a + s @ w1b + b1
    h1 = (jnp.dot(a, w1a_ref[...], preferred_element_type=jnp.float32)
          + jnp.dot(s, w1b_ref[...], preferred_element_type=jnp.float32)
          + b1_ref[...])
    h1 = jnp.maximum(h1, 0.0)                                       # ReLU (f32)

    h2 = jnp.dot(h1.astype(jnp.bfloat16), w2_ref[...],
                 preferred_element_type=jnp.float32) + b2_ref[...]
    h2 = jnp.maximum(h2, 0.0)                                       # ReLU (f32)

    y = jnp.dot(h2.astype(jnp.bfloat16), w3_ref[...],
                preferred_element_type=jnp.float32) + b3_ref[...]
    out_ref[...] = y.astype(out_ref.dtype)


def prepare_params(params, hidden=128):
    """One-time weight preparation (split first-layer weight, bf16 casts).

    Call once (e.g. after init / after each optimizer step), reuse the result
    across forward calls so the per-call wrapper does no weight work.
    """
    H = hidden
    bf = jnp.bfloat16
    return {
        "emb": params["emb"].astype(jnp.float32),
        "w1a": params["w1"][:H, :].astype(bf),    # rows hit by action latent
        "w1b": params["w1"][H:, :].astype(bf),    # rows hit by state latent
        "b1": params["b1"].astype(jnp.float32),
        "w2": params["w2"].astype(bf),
        "b2": params["b2"].astype(jnp.float32),
        "w3": params["w3"].astype(bf),
        "b3": params["b3"].astype(jnp.float32),
    }


def _pick_batch_tile(B):
    """Batch tile: multiple of 16, large enough to amortize per-step overhead,
    and (when batch allows) >= 2 grid blocks so v7x megacore can shard."""
    TB_MAX = 1024
    Bp0 = _round_up(B, 16)
    if Bp0 <= TB_MAX:
        if Bp0 >= 32:
            TB = _round_up(pl.cdiv(Bp0, 2), 16)   # two blocks for megacore
        else:
            TB = Bp0                              # tiny batch: single block
    else:
        TB = TB_MAX
    Bp = _round_up(B, TB)
    return TB, Bp


@functools.partial(jax.jit, static_argnames=("out_dtype",))
def forward_model_forward(state_latent, action, prepped, out_dtype=jnp.float32):
    """Pallas forward pass of ForwardModel (discrete actions).

    state_latent: [B, F] float32
    action:       [B]    int
    prepped:      output of prepare_params()
    returns:      [B, F] predicted next-state latent (out_dtype)
    """
    B, F = state_latent.shape
    H = 128  # action latent width == hidden width

    # ---- glue: embedding lookup (nn.Embedding) --------------------------
    emb = jnp.take(prepped["emb"], action.astype(jnp.int32), axis=0)   # [B, H] f32

    # ---- batch tiling ----------------------------------------------------
    TB, Bp = _pick_batch_tile(B)
    n_blocks = Bp // TB

    a_in = emb
    s_in = state_latent.astype(jnp.float32)
    if Bp != B:
        # only the ragged remainder is padded; no feature-dim padding, no cast
        a_in = jnp.pad(a_in, ((0, Bp - B), (0, 0)))
        s_in = jnp.pad(s_in, ((0, Bp - B), (0, 0)))

    w1a, w1b = prepped["w1a"], prepped["w1b"]
    w2, w3 = prepped["w2"], prepped["w3"]
    b1, b2, b3 = prepped["b1"], prepped["b2"], prepped["b3"]

    # weights / biases: constant index_map -> stay resident in VMEM
    def resident(arr):
        return pl.BlockSpec(arr.shape, lambda i: (0,) * arr.ndim)

    flops = 2 * Bp * (H * H + F * H + H * H + H * F)
    bytes_accessed = (
        _nbytes((Bp, H), jnp.float32) + _nbytes((Bp, F), jnp.float32)
        + _nbytes(w1a.shape, w1a.dtype) + _nbytes(w1b.shape, w1b.dtype)
        + _nbytes(b1.shape, b1.dtype) + _nbytes(w2.shape, w2.dtype)
        + _nbytes(b2.shape, b2.dtype) + _nbytes(w3.shape, w3.dtype)
        + _nbytes(b3.shape, b3.dtype) + _nbytes((Bp, F), out_dtype))

    out = pl.pallas_call(
        _forward_model_kernel,
        out_shape=jax.ShapeDtypeStruct((Bp, F), out_dtype),
        grid=(n_blocks,),
        in_specs=[
            pl.BlockSpec((TB, H), lambda i: (i, 0)),   # action latent tile (f32)
            pl.BlockSpec((TB, F), lambda i: (i, 0)),   # state latent tile  (f32)
            resident(w1a), resident(w1b), resident(b1),
            resident(w2), resident(b2),
            resident(w3), resident(b3),
        ],
        out_specs=pl.BlockSpec((TB, F), lambda i: (i, 0)),
        compiler_params=pltpu.CompilerParams(
            dimension_semantics=("parallel",)),
        cost_estimate=pl.CostEstimate(
            flops=flops, transcendentals=0, bytes_accessed=bytes_accessed),
    )(a_in, s_in, w1a, w1b, b1, w2, b2, w3, b3)

    if Bp != B:
        out = out[:B]
    return out


def init_params(key, n_actions, state_latent_features, hidden=128,
                action_latent=128):
    """PyTorch-style init: Embedding ~ N(0,1); Linear ~ U(+-1/sqrt(fan_in))."""
    in_dim = action_latent + state_latent_features
    ks = jax.random.split(key, 7)

    def uni(k, shape, fan_in):
        bound = 1.0 / jnp.sqrt(fan_in)
        return jax.random.uniform(k, shape, jnp.float32, -bound, bound)

    return {
        "emb": jax.random.normal(ks[0], (n_actions, action_latent), jnp.float32),
        "w1": uni(ks[1], (in_dim, hidden), in_dim),
        "b1": uni(ks[2], (1, hidden), in_dim),
        "w2": uni(ks[3], (hidden, hidden), hidden),
        "b2": uni(ks[4], (1, hidden), hidden),
        "w3": uni(ks[5], (hidden, state_latent_features), hidden),
        "b3": uni(ks[6], (1, state_latent_features), hidden),
    }


def _reference_forward(state_latent, action, params):
    """Mirrors the PyTorch module (matmuls in bf16 with f32 accumulation,
    matching the kernel's MXU dtype choice)."""
    emb = jnp.take(params["emb"], action.astype(jnp.int32), axis=0)
    x = jnp.concatenate([emb, state_latent], axis=-1)
    bf = jnp.bfloat16
    h1 = jnp.maximum(
        jnp.dot(x.astype(bf), params["w1"].astype(bf),
                preferred_element_type=jnp.float32) + params["b1"], 0.0)
    h2 = jnp.maximum(
        jnp.dot(h1.astype(bf), params["w2"].astype(bf),
                preferred_element_type=jnp.float32) + params["b2"], 0.0)
    return jnp.dot(h2.astype(bf), params["w3"].astype(bf),
                   preferred_element_type=jnp.float32) + params["b3"]


if __name__ == "__main__":
    key = jax.random.PRNGKey(0)
    B = 8        # batch
    F = 32       # state_latent_features
    A = 6        # n_actions (discrete)

    k_p, k_s, k_a = jax.random.split(key, 3)
    params = init_params(k_p, A, F)
    prepped = prepare_params(params)      # one-time weight prep, reused per call
    state_latent = jax.random.normal(k_s, (B, F), jnp.float32)
    action = jax.random.randint(k_a, (B,), 0, A, jnp.int32)

    out = forward_model_forward(state_latent, action, prepped)
    out = jax.block_until_ready(out)

    ref = _reference_forward(state_latent, action, params)
    assert out.shape == (B, F)
    err = float(jnp.max(jnp.abs(out - ref)))
    assert err < 5e-3, f"max abs err {err}"

    print("KERNEL_OK")
</pallas_src>

<mosaic_0001>
module attributes {stable_mosaic.version = 11 : i64} {
  func.func @_forward_model_kernel(%arg0: i32, %arg1: memref<16x128xf32, #tpu.memory_space<vmem>>, %arg2: memref<16x32xf32, #tpu.memory_space<vmem>>, %arg3: memref<128x128xbf16, #tpu.memory_space<vmem>>, %arg4: memref<32x128xbf16, #tpu.memory_space<vmem>>, %arg5: memref<1x128xf32, #tpu.memory_space<vmem>>, %arg6: memref<128x128xbf16, #tpu.memory_space<vmem>>, %arg7: memref<1x128xf32, #tpu.memory_space<vmem>>, %arg8: memref<128x32xbf16, #tpu.memory_space<vmem>>, %arg9: memref<1x32xf32, #tpu.memory_space<vmem>>, %arg10: memref<16x32xf32, #tpu.memory_space<vmem>>) attributes {dimension_semantics = [#tpu.dimension_semantics<parallel>], iteration_bounds = array<i64: 1>, scalar_prefetch = 0 : i64, scratch_operands = 0 : i64, tpu.core_type = #tpu.core_type<tc>, window_params = [{transform_indices = @transform_0, window_bounds = array<i64: 16, 128>}, {transform_indices = @transform_1, window_bounds = array<i64: 16, 32>}, {pipeline_mode = #tpu.pipeline_mode<synchronous>, transform_indices = @transform_2, window_bounds = array<i64: 128, 128>}, {pipeline_mode = #tpu.pipeline_mode<synchronous>, transform_indices = @transform_3, window_bounds = array<i64: 32, 128>}, {pipeline_mode = #tpu.pipeline_mode<synchronous>, transform_indices = @transform_4, window_bounds = array<i64: 1, 128>}, {pipeline_mode = #tpu.pipeline_mode<synchronous>, transform_indices = @transform_5, window_bounds = array<i64: 128, 128>}, {pipeline_mode = #tpu.pipeline_mode<synchronous>, transform_indices = @transform_6, window_bounds = array<i64: 1, 128>}, {pipeline_mode = #tpu.pipeline_mode<synchronous>, transform_indices = @transform_7, window_bounds = array<i64: 128, 32>}, {pipeline_mode = #tpu.pipeline_mode<synchronous>, transform_indices = @transform_8, window_bounds = array<i64: 1, 32>}, {transform_indices = @transform_9, window_bounds = array<i64: 16, 32>}]} {
    %c0 = arith.constant 0 : index
    %c0_0 = arith.constant 0 : index
    %0 = vector.load %arg1[%c0, %c0_0] : memref<16x128xf32, #tpu.memory_space<vmem>>, vector<16x128xf32>
    %1 = arith.truncf %0 : vector<16x128xf32> to vector<16x128xbf16>
    %c0_1 = arith.constant 0 : index
    %c0_2 = arith.constant 0 : index
    %2 = vector.load %arg2[%c0_1, %c0_2] : memref<16x32xf32, #tpu.memory_space<vmem>>, vector<16x32xf32>
    %3 = arith.truncf %2 : vector<16x32xf32> to vector<16x32xbf16>
    %c0_3 = arith.constant 0 : index
    %c0_4 = arith.constant 0 : index
    %4 = vector.load %arg3[%c0_3, %c0_4] : memref<128x128xbf16, #tpu.memory_space<vmem>>, vector<128x128xbf16>
    %cst = arith.constant dense<0.000000e+00> : vector<16x128xf32>
    %5 = tpu.matmul %1, %4, %cst {dimension_numbers = #tpu.dot_dimension_numbers<[1], [0], [0], [1], [0, 0, 1, 1], [], []>} : vector<16x128xbf16>, vector<128x128xbf16>, vector<16x128xf32> -> vector<16x128xf32>
    %c0_5 = arith.constant 0 : index
    %c0_6 = arith.constant 0 : index
    %6 = vector.load %arg4[%c0_5, %c0_6] : memref<32x128xbf16, #tpu.memory_space<vmem>>, vector<32x128xbf16>
    %cst_7 = arith.constant dense<0.000000e+00> : vector<16x128xf32>
    %7 = tpu.matmul %3, %6, %cst_7 {dimension_numbers = #tpu.dot_dimension_numbers<[1], [0], [0], [1], [0, 0, 1, 1], [], []>} : vector<16x32xbf16>, vector<32x128xbf16>, vector<16x128xf32> -> vector<16x128xf32>
    %8 = arith.addf %5, %7 : vector<16x128xf32>
    %c0_8 = arith.constant 0 : index
    %c0_9 = arith.constant 0 : index
    %9 = vector.load %arg5[%c0_8, %c0_9] : memref<1x128xf32, #tpu.memory_space<vmem>>, vector<1x128xf32>
    %10 = vector.broadcast %9 : vector<1x128xf32> to vector<16x128xf32>
    %11 = arith.addf %8, %10 : vector<16x128xf32>
    %cst_10 = arith.constant 0.000000e+00 : f32
    %12 = vector.broadcast %cst_10 : f32 to vector<16x128xf32>
    %13 = arith.maximumf %11, %12 : vector<16x128xf32>
    %14 = arith.truncf %13 : vector<16x128xf32> to vector<16x128xbf16>
    %c0_11 = arith.constant 0 : index
    %c0_12 = arith.constant 0 : index
    %15 = vector.load %arg6[%c0_11, %c0_12] : memref<128x128xbf16, #tpu.memory_space<vmem>>, vector<128x128xbf16>
    %cst_13 = arith.constant dense<0.000000e+00> : vector<16x128xf32>
    %16 = tpu.matmul %14, %15, %cst_13 {dimension_numbers = #tpu.dot_dimension_numbers<[1], [0], [0], [1], [0, 0, 1, 1], [], []>} : vector<16x128xbf16>, vector<128x128xbf16>, vector<16x128xf32> -> vector<16x128xf32>
    %c0_14 = arith.constant 0 : index
    %c0_15 = arith.constant 0 : index
    %17 = vector.load %arg7[%c0_14, %c0_15] : memref<1x128xf32, #tpu.memory_space<vmem>>, vector<1x128xf32>
    %18 = vector.broadcast %17 : vector<1x128xf32> to vector<16x128xf32>
    %19 = arith.addf %16, %18 : vector<16x128xf32>
    %cst_16 = arith.constant 0.000000e+00 : f32
    %20 = vector.broadcast %cst_16 : f32 to vector<16x128xf32>
    %21 = arith.maximumf %19, %20 : vector<16x128xf32>
    %22 = arith.truncf %21 : vector<16x128xf32> to vector<16x128xbf16>
    %c0_17 = arith.constant 0 : index
    %c0_18 = arith.constant 0 : index
    %23 = vector.load %arg8[%c0_17, %c0_18] : memref<128x32xbf16, #tpu.memory_space<vmem>>, vector<128x32xbf16>
    %cst_19 = arith.constant dense<0.000000e+00> : vector<16x32xf32>
    %24 = tpu.matmul %22, %23, %cst_19 {dimension_numbers = #tpu.dot_dimension_numbers<[1], [0], [0], [1], [0, 0, 1, 1], [], []>} : vector<16x128xbf16>, vector<128x32xbf16>, vector<16x32xf32> -> vector<16x32xf32>
    %c0_20 = arith.constant 0 : index
    %c0_21 = arith.constant 0 : index
    %25 = vector.load %arg9[%c0_20, %c0_21] : memref<1x32xf32, #tpu.memory_space<vmem>>, vector<1x32xf32>
    %26 = vector.broadcast %25 : vector<1x32xf32> to vector<16x32xf32>
    %27 = arith.addf %24, %26 : vector<16x32xf32>
    %c0_22 = arith.constant 0 : index
    %c0_23 = arith.constant 0 : index
    %28 = vector.load %arg10[%c0_22, %c0_23] : memref<16x32xf32, #tpu.memory_space<vmem>>, vector<16x32xf32>
    tpu.vector_store %arg10[%c0_22, %c0_23], %27 {strides = array<i32>} : memref<16x32xf32, #tpu.memory_space<vmem>>, vector<16x32xf32>,
    return
  }
  func.func @transform_0(%arg0: i32) -> (i32, i32) {
    %c0_i32 = arith.constant 0 : i32
    %c0_i32_0 = arith.constant 0 : i32
    return %arg0, %c0_i32 : i32, i32
  }
  func.func @transform_1(%arg0: i32) -> (i32, i32) {
    %c0_i32 = arith.constant 0 : i32
    %c0_i32_0 = arith.constant 0 : i32
    return %arg0, %c0_i32 : i32, i32
  }
  func.func @transform_2(%arg0: i32) -> (i32, i32) {
    %c0_i32 = arith.constant 0 : i32
    %c0_i32_0 = arith.constant 0 : i32
    %c0_i32_1 = arith.constant 0 : i32
    return %c0_i32, %c0_i32_0 : i32, i32
  }
  func.func @transform_3(%arg0: i32) -> (i32, i32) {
    %c0_i32 = arith.constant 0 : i32
    %c0_i32_0 = arith.constant 0 : i32
    %c0_i32_1 = arith.constant 0 : i32
    return %c0_i32, %c0_i32_0 : i32, i32
  }
  func.func @transform_4(%arg0: i32) -> (i32, i32) {
    %c0_i32 = arith.constant 0 : i32
    %c0_i32_0 = arith.constant 0 : i32
    %c0_i32_1 = arith.constant 0 : i32
    return %c0_i32, %c0_i32_0 : i32, i32
  }
  func.func @transform_5(%arg0: i32) -> (i32, i32) {
    %c0_i32 = arith.constant 0 : i32
    %c0_i32_0 = arith.constant 0 : i32
    %c0_i32_1 = arith.constant 0 : i32
    return %c0_i32, %c0_i32_0 : i32, i32
  }
  func.func @transform_6(%arg0: i32) -> (i32, i32) {
    %c0_i32 = arith.constant 0 : i32
    %c0_i32_0 = arith.constant 0 : i32
    %c0_i32_1 = arith.constant 0 : i32
    return %c0_i32, %c0_i32_0 : i32, i32
  }
  func.func @transform_7(%arg0: i32) -> (i32, i32) {
    %c0_i32 = arith.constant 0 : i32
    %c0_i32_0 = arith.constant 0 : i32
    %c0_i32_1 = arith.constant 0 : i32
    return %c0_i32, %c0_i32_0 : i32, i32
  }
  func.func @transform_8(%arg0: i32) -> (i32, i32) {
    %c0_i32 = arith.constant 0 : i32
    %c0_i32_0 = arith.constant 0 : i32
    %c0_i32_1 = arith.constant 0 : i32
    return %c0_i32, %c0_i32_0 : i32, i32
  }
  func.func @transform_9(%arg0: i32) -> (i32, i32) {
    %c0_i32 = arith.constant 0 : i32
    %c0_i32_0 = arith.constant 0 : i32
    return %arg0, %c0_i32 : i32, i32
  }
}

</mosaic_0001>

<llo_original>
// kernel: forward_model_forward.1
$region0: #{forward_model_forward.1}
  #allocation0 [shape = 'u32[]', space=smem, size = 0x4, offset = 0x4, fixed_abs, tag = 'smem constant byte address 0x4 - core index']
  #allocation1 [shape = 'u32[144,128]{1,0:T(1,128)}', space=vmem, size = 0x12000, scoped, tag = 'internal scratch']
  %s0 = inlined_call_operand.vmem [shape: f32[16,128], index: 0, kind: input, shape index: {}]
  %s1 = inlined_call_operand.vmem [shape: f32[16,32], index: 1, kind: input, shape index: {}]
  %s2 = inlined_call_operand.vmem [shape: bf16[128,128], index: 2, kind: input, shape index: {}]
  %s3 = inlined_call_operand.vmem [shape: bf16[32,128], index: 3, kind: input, shape index: {}]
  %s4 = inlined_call_operand.vmem [shape: f32[1,128], index: 4, kind: input, shape index: {}]
  %s5 = inlined_call_operand.vmem [shape: bf16[128,128], index: 5, kind: input, shape index: {}]
  %s6 = inlined_call_operand.vmem [shape: f32[1,128], index: 6, kind: input, shape index: {}]
  %s7 = inlined_call_operand.vmem [shape: bf16[128,32], index: 7, kind: input, shape index: {}]
  %s8 = inlined_call_operand.vmem [shape: f32[1,32], index: 8, kind: input, shape index: {}]
  %s9 = inlined_call_operand.vmem [shape: f32[16,32], index: 9, kind: output, shape index: {}]
  %s10 = sld [smem:[#allocation0]]
  $region46: #{forward_model_forward.1} parent=0
    _
  %s12 = ssub.s32 1, %s10
  %s13 = scalar_select 0, %s12, %s10
  // Predicated region
  $region2: #{forward_model_forward.1} parent=0 // pred_check
    _
  $region3: #{forward_model_forward.1} parent=0 // pred_check_branch
    %15 = sbr.rel (0) target = $region5
  $region4: #{forward_model_forward.1} parent=0 // pred_region
    _
  $region5: #{forward_model_forward.1} parent=0 // pred_fallthru
    _
  // Predicated region
  $region6: #{forward_model_forward.1} parent=0 // pred_check
    _
  $region7: #{forward_model_forward.1} parent=0 // pred_check_branch
    %17 = sbr.rel (0) target = $region9
  $region8: #{forward_model_forward.1} parent=0 // pred_region
    _
  $region9: #{forward_model_forward.1} parent=0 // pred_fallthru
    _
  // Predicated region
  $region10: #{forward_model_forward.1} parent=0 // pred_check
    _
  $region11: #{forward_model_forward.1} parent=0 // pred_check_branch
    %19 = sbr.rel (0) target = $region13
  $region12: #{forward_model_forward.1} parent=0 // pred_region
    _
  $region13: #{forward_model_forward.1} parent=0 // pred_fallthru
    _
  // Predicated region
  $region14: #{forward_model_forward.1} parent=0 // pred_check
    _
  $region15: #{forward_model_forward.1} parent=0 // pred_check_branch
    %21 = sbr.rel (0) target = $region17
  $region16: #{forward_model_forward.1} parent=0 // pred_region
    _
  $region17: #{forward_model_forward.1} parent=0 // pred_fallthru
    _
  // Predicated region
  $region18: #{forward_model_forward.1} parent=0 // pred_check
    _
  $region19: #{forward_model_forward.1} parent=0 // pred_check_branch
    %23 = sbr.rel (0) target = $region21
  $region20: #{forward_model_forward.1} parent=0 // pred_region
    _
  $region21: #{forward_model_forward.1} parent=0 // pred_fallthru
    _
  // Predicated region
  $region22: #{forward_model_forward.1} parent=0 // pred_check
    _
  $region23: #{forward_model_forward.1} parent=0 // pred_check_branch
    %25 = sbr.rel (0) target = $region25
  $region24: #{forward_model_forward.1} parent=0 // pred_region
    _
  $region25: #{forward_model_forward.1} parent=0 // pred_fallthru
    _
  // Predicated region
  $region26: #{forward_model_forward.1} parent=0 // pred_check
    _
  $region27: #{forward_model_forward.1} parent=0 // pred_check_branch
    %27 = sbr.rel (0) target = $region29
  $region28: #{forward_model_forward.1} parent=0 // pred_region
    _
  $region29: #{forward_model_forward.1} parent=0 // pred_fallthru
    _
  // Predicated region
  $region30: #{forward_model_forward.1} parent=0 // pred_check
    _
  $region31: #{forward_model_forward.1} parent=0 // pred_check_branch
    %29 = sbr.rel (0) target = $region33
  $region32: #{forward_model_forward.1} parent=0 // pred_region
    _
  $region33: #{forward_model_forward.1} parent=0 // pred_fallthru
    _
  // Predicated region
  $region34: #{forward_model_forward.1} parent=0 // pred_check
    _
  $region35: #{forward_model_forward.1} parent=0 // pred_check_branch
    %31 = sbr.rel (0) target = $region37
  $region36: #{forward_model_forward.1} parent=0 // pred_region
    _
  $region37: #{forward_model_forward.1} parent=0 // pred_fallthru
    _
  %v33 = vld [vmem:[%s0] sm:$0xff]
  %v34 = vld [vmem:[%s0 + $0x8] sm:$0xff]
  %v35 = vpack.c.bf16 %v34, %v33
  %v36 = vld [vmem:[%s1] sm:$0xff]
  %v37 = vld [vmem:[%s1 + $0x8] sm:$0xff]
  %v38 = vpack.c.bf16 %v37, %v36
  %v39 = vld [vmem:[%s2] sm:$0xf]
  %v40 = vld [vmem:[%s2 + $0x4] sm:$0xf]
  %v41 = vld [vmem:[%s2 + $0x8] sm:$0xf]
  %v42 = vld [vmem:[%s2 + $0xc] sm:$0xf]
  %v43 = vld [vmem:[%s2 + $0x10] sm:$0xf]
  %v44 = vld [vmem:[%s2 + $0x14] sm:$0xf]
  %v45 = vld [vmem:[%s2 + $0x18] sm:$0xf]
  %v46 = vld [vmem:[%s2 + $0x1c] sm:$0xf]
  %v47 = vld [vmem:[%s2 + $0x20] sm:$0xf]
  %v48 = vld [vmem:[%s2 + $0x24] sm:$0xf]
  %v49 = vld [vmem:[%s2 + $0x28] sm:$0xf]
  %v50 = vld [vmem:[%s2 + $0x2c] sm:$0xf]
  %v51 = vld [vmem:[%s2 + $0x30] sm:$0xf]
  %v52 = vld [vmem:[%s2 + $0x34] sm:$0xf]
  %v53 = vld [vmem:[%s2 + $0x38] sm:$0xf]
  %v54 = vld [vmem:[%s2 + $0x3c] sm:$0xf]
  %v55 = vld [vmem:[%s3] sm:$0xf]
  %v56 = vld [vmem:[%s3 + $0x4] sm:$0xf]
  %v57 = vld [vmem:[%s3 + $0x8] sm:$0xf]
  %v58 = vld [vmem:[%s3 + $0xc] sm:$0xf]
  %v63 = vunpack.c.l.b16 %v55
  %v64 = vunpack.c.l.b16 %v56
  %v65 = vunpack.c.l.b16 %v57
  %v66 = vunpack.c.l.b16 %v58
  %v67 = vpack.c.b16 %v64, %v63
  %v68 = vpack.c.b16 %v66, %v65
  %vm71 = vcmask 261120
  %v73 = vsel %vm71, %v38, 0
  %75 = vmatprep.subr.bf16.mxu0 0
  %76 = vmatpush1.bf16.msra.mxu0 0
  %77 = vmatprep.subr.bf16.mxu0 0
  %78 = vmatpush1.bf16.msra.mxu0 0
  %79 = vmatprep.subr.bf16.mxu0 0
  %80 = vmatpush1.bf16.msra.mxu0 0
  %81 = vmatprep.subr.bf16.mxu0 0
  %82 = vmatpush1.bf16.msra.mxu0 0
  %83 = vmatprep.subr.bf16.mxu0 0
  %84 = vmatpush1.bf16.msra.mxu0 0
  %85 = vmatprep.subr.bf16.mxu0 0
  %86 = vmatpush1.bf16.msra.mxu0 0
  %87 = vmatprep.subr.bf16.mxu0 0
  %88 = vmatpush1.bf16.msra.mxu0 %v68
  %89 = vmatprep.subr.bf16.mxu0 0
  %90 = vmatpush1.bf16.msra.mxu0 %v67
  %91 = vmatprep.subr.bf16.mxu0 0
  %92 = vmatpush2.bf16.msra.mxu0 0
  %93 = vmatprep.subr.bf16.mxu0 0
  %94 = vmatpush2.bf16.msra.mxu0 0
  %95 = vmatprep.subr.bf16.mxu0 0
  %96 = vmatpush2.bf16.msra.mxu0 0
  %97 = vmatprep.subr.bf16.mxu0 0
  %98 = vmatpush2.bf16.msra.mxu0 0
  %99 = vmatprep.subr.bf16.mxu0 0
  %100 = vmatpush2.bf16.msra.mxu0 0
  %101 = vmatprep.subr.bf16.mxu0 0
  %102 = vmatpush2.bf16.msra.mxu0 0
  %103 = vmatprep.subr.bf16.mxu0 0
  %104 = vmatpush2.bf16.msra.mxu0 0
  %105 = vmatprep.subr.bf16.mxu0 0
  %106 = vmatpush2.bf16.msra.mxu0 0
  %107 = vmatprep.mubr.bf16.mxu0 0
  %108 = vmatmul.mubr.bf16.gmra.mxu0 %v73
  %v109 = vpop.f32.mrf.mxu0
  %v110 = vadd.f32 0.0, %v109
  %v111 = vpop.f32.mrf.mxu0
  %v112 = vpop.f32.mrf.mxu0
  %v113 = vadd.f32 0.0, %v112
  %v114 = vpop.f32.mrf.mxu0
  %115 = vdwg.mxu0
  %v132 = vunpack.c.l.b16 %v39
  %v133 = vunpack.c.l.b16 %v40
  %v134 = vunpack.c.l.b16 %v41
  %v135 = vunpack.c.l.b16 %v42
  %v136 = vunpack.c.l.b16 %v43
  %v137 = vunpack.c.l.b16 %v44
  %v138 = vunpack.c.l.b16 %v45
  %v139 = vunpack.c.l.b16 %v46
  %v140 = vunpack.c.l.b16 %v47
  %v141 = vunpack.c.l.b16 %v48
  %v142 = vunpack.c.l.b16 %v49
  %v143 = vunpack.c.l.b16 %v50
  %v144 = vunpack.c.l.b16 %v51
  %v145 = vunpack.c.l.b16 %v52
  %v146 = vunpack.c.l.b16 %v53
  %v147 = vunpack.c.l.b16 %v54
  %v148 = vpack.c.b16 %v133, %v132
  %v149 = vpack.c.b16 %v135, %v134
  %v150 = vpack.c.b16 %v137, %v136
  %v151 = vpack.c.b16 %v139, %v138
  %v152 = vpack.c.b16 %v141, %v140
  %v153 = vpack.c.b16 %v143, %v142
  %v154 = vpack.c.b16 %v145, %v144
  %v155 = vpack.c.b16 %v147, %v146
  %164 = vmatprep.subr.bf16.mxu0 0
  %165 = vmatpush1.bf16.msra.mxu0 %v155
  %166 = vmatprep.subr.bf16.mxu0 0
  %167 = vmatpush1.bf16.msra.mxu0 %v154
  %168 = vmatprep.subr.bf16.mxu0 0
  %169 = vmatpush1.bf16.msra.mxu0 %v153
  %170 = vmatprep.subr.bf16.mxu0 0
  %171 = vmatpush1.bf16.msra.mxu0 %v152
  %172 = vmatprep.subr.bf16.mxu0 0
  %173 = vmatpush1.bf16.msra.mxu0 %v151
  %174 = vmatprep.subr.bf16.mxu0 0
  %175 = vmatpush1.bf16.msra.mxu0 %v150
  %176 = vmatprep.subr.bf16.mxu0 0
  %177 = vmatpush1.bf16.msra.mxu0 %v149
  %178 = vmatprep.subr.bf16.mxu0 0
  %179 = vmatpush1.bf16.msra.mxu0 %v148
  %180 = vmatprep.subr.bf16.mxu0 0
  %181 = vmatpush2.bf16.msra.mxu0 0
  %182 = vmatprep.subr.bf16.mxu0 0
  %183 = vmatpush2.bf16.msra.mxu0 0
  %184 = vmatprep.subr.bf16.mxu0 0
  %185 = vmatpush2.bf16.msra.mxu0 0
  %186 = vmatprep.subr.bf16.mxu0 0
  %187 = vmatpush2.bf16.msra.mxu0 0
  %188 = vmatprep.subr.bf16.mxu0 0
  %189 = vmatpush2.bf16.msra.mxu0 0
  %190 = vmatprep.subr.bf16.mxu0 0
  %191 = vmatpush2.bf16.msra.mxu0 0
  %192 = vmatprep.subr.bf16.mxu0 0
  %193 = vmatpush2.bf16.msra.mxu0 0
  %194 = vmatprep.subr.bf16.mxu0 0
  %195 = vmatpush2.bf16.msra.mxu0 0
  %196 = vmatprep.mubr.bf16.mxu0 0
  %197 = vmatmul.mubr.bf16.gmra.mxu0 %v35
  %v198 = vpop.f32.mrf.mxu0
  %v199 = vadd.f32 %v110, %v198
  %v200 = vpop.f32.mrf.mxu0
  %v201 = vpop.f32.mrf.mxu0
  %v202 = vadd.f32 %v113, %v201
  %v203 = vpop.f32.mrf.mxu0
  %204 = vdwg.mxu0
  %v205 = vld [vmem:[%s4] sm:$0x1]
  %v207 = vlaneseq
  %v208 = vshrl.u32 %v207, 7
  %v209 = vsub.s32 0, %v208
  %v210 = vrot.slane %v205, %v209
  %v212 = vadd.f32 %v199, %v210
  %v213 = vadd.f32 %v202, %v210
  %v214 = vmax.f32 %v212, 0.0
  %v215 = vmax.f32 %v213, 0.0
  %v216 = vpack.c.bf16 %v215, %v214
  %v217 = vld [vmem:[%s5] sm:$0xf]
  %v218 = vld [vmem:[%s5 + $0x4] sm:$0xf]
  %v219 = vld [vmem:[%s5 + $0x8] sm:$0xf]
  %v220 = vld [vmem:[%s5 + $0xc] sm:$0xf]
  %v221 = vld [vmem:[%s5 + $0x10] sm:$0xf]
  %v222 = vld [vmem:[%s5 + $0x14] sm:$0xf]
  %v223 = vld [vmem:[%s5 + $0x18] sm:$0xf]
  %v224 = vld [vmem:[%s5 + $0x1c] sm:$0xf]
  %v225 = vld [vmem:[%s5 + $0x20] sm:$0xf]
  %v226 = vld [vmem:[%s5 + $0x24] sm:$0xf]
  %v227 = vld [vmem:[%s5 + $0x28] sm:$0xf]
  %v228 = vld [vmem:[%s5 + $0x2c] sm:$0xf]
  %v229 = vld [vmem:[%s5 + $0x30] sm:$0xf]
  %v230 = vld [vmem:[%s5 + $0x34] sm:$0xf]
  %v231 = vld [vmem:[%s5 + $0x38] sm:$0xf]
  %v232 = vld [vmem:[%s5 + $0x3c] sm:$0xf]
  %v233 = vld [vmem:[%s6] sm:$0x1]
  %v235 = vlaneseq
  %v236 = vshrl.u32 %v235, 7
  %v237 = vsub.s32 0, %v236
  %v238 = vrot.slane %v233, %v237
  %v256 = vunpack.c.l.b16 %v217
  %v257 = vunpack.c.l.b16 %v218
  %v258 = vunpack.c.l.b16 %v219
  %v259 = vunpack.c.l.b16 %v220
  %v260 = vunpack.c.l.b16 %v221
  %v261 = vunpack.c.l.b16 %v222
  %v262 = vunpack.c.l.b16 %v223
  %v263 = vunpack.c.l.b16 %v224
  %v264 = vunpack.c.l.b16 %v225
  %v265 = vunpack.c.l.b16 %v226
  %v266 = vunpack.c.l.b16 %v227
  %v267 = vunpack.c.l.b16 %v228
  %v268 = vunpack.c.l.b16 %v229
  %v269 = vunpack.c.l.b16 %v230
  %v270 = vunpack.c.l.b16 %v231
  %v271 = vunpack.c.l.b16 %v232
  %v272 = vpack.c.b16 %v257, %v256
  %v273 = vpack.c.b16 %v259, %v258
  %v274 = vpack.c.b16 %v261, %v260
  %v275 = vpack.c.b16 %v263, %v262
  %v276 = vpack.c.b16 %v265, %v264
  %v277 = vpack.c.b16 %v267, %v266
  %v278 = vpack.c.b16 %v269, %v268
  %v279 = vpack.c.b16 %v271, %v270
  %288 = vmatprep.subr.bf16.mxu0 0
  %289 = vmatpush1.bf16.msra.mxu0 %v279
  %290 = vmatprep.subr.bf16.mxu0 0
  %291 = vmatpush1.bf16.msra.mxu0 %v278
  %292 = vmatprep.subr.bf16.mxu0 0
  %293 = vmatpush1.bf16.msra.mxu0 %v277
  %294 = vmatprep.subr.bf16.mxu0 0
  %295 = vmatpush1.bf16.msra.mxu0 %v276
  %296 = vmatprep.subr.bf16.mxu0 0
  %297 = vmatpush1.bf16.msra.mxu0 %v275
  %298 = vmatprep.subr.bf16.mxu0 0
  %299 = vmatpush1.bf16.msra.mxu0 %v274
  %300 = vmatprep.subr.bf16.mxu0 0
  %301 = vmatpush1.bf16.msra.mxu0 %v273
  %302 = vmatprep.subr.bf16.mxu0 0
  %303 = vmatpush1.bf16.msra.mxu0 %v272
  %304 = vmatprep.subr.bf16.mxu0 0
  %305 = vmatpush2.bf16.msra.mxu0 0
  %306 = vmatprep.subr.bf16.mxu0 0
  %307 = vmatpush2.bf16.msra.mxu0 0
  %308 = vmatprep.subr.bf16.mxu0 0
  %309 = vmatpush2.bf16.msra.mxu0 0
  %310 = vmatprep.subr.bf16.mxu0 0
  %311 = vmatpush2.bf16.msra.mxu0 0
  %312 = vmatprep.subr.bf16.mxu0 0
  %313 = vmatpush2.bf16.msra.mxu0 0
  %314 = vmatprep.subr.bf16.mxu0 0
  %315 = vmatpush2.bf16.msra.mxu0 0
  %316 = vmatprep.subr.bf16.mxu0 0
  %317 = vmatpush2.bf16.msra.mxu0 0
  %318 = vmatprep.subr.bf16.mxu0 0
  %319 = vmatpush2.bf16.msra.mxu0 0
  %320 = vmatprep.mubr.bf16.mxu0 0
  %321 = vmatmul.mubr.bf16.gmra.mxu0 %v216
  %v322 = vpop.f32.mrf.mxu0
  %v323 = vadd.f32 %v238, %v322
  %v324 = vpop.f32.mrf.mxu0
  %v325 = vpop.f32.mrf.mxu0
  %v326 = vadd.f32 %v238, %v325
  %v327 = vpop.f32.mrf.mxu0
  %328 = vdwg.mxu0
  %v329 = vmax.f32 %v323, 0.0
  %v330 = vmax.f32 %v326, 0.0
  %v331 = vpack.c.bf16 %v330, %v329
  %v332 = vld [vmem:[%s7] sm:$0xf]
  %v333 = vld [vmem:[%s7 + $0x4] sm:$0xf]
  %v334 = vld [vmem:[%s7 + $0x8] sm:$0xf]
  %v335 = vld [vmem:[%s7 + $0xc] sm:$0xf]
  %v336 = vld [vmem:[%s7 + $0x10] sm:$0xf]
  %v337 = vld [vmem:[%s7 + $0x14] sm:$0xf]
  %v338 = vld [vmem:[%s7 + $0x18] sm:$0xf]
  %v339 = vld [vmem:[%s7 + $0x1c] sm:$0xf]
  %v340 = vld [vmem:[%s7 + $0x20] sm:$0xf]
  %v341 = vld [vmem:[%s7 + $0x24] sm:$0xf]
  %v342 = vld [vmem:[%s7 + $0x28] sm:$0xf]
  %v343 = vld [vmem:[%s7 + $0x2c] sm:$0xf]
  %v344 = vld [vmem:[%s7 + $0x30] sm:$0xf]
  %v345 = vld [vmem:[%s7 + $0x34] sm:$0xf]
  %v346 = vld [vmem:[%s7 + $0x38] sm:$0xf]
  %v347 = vld [vmem:[%s7 + $0x3c] sm:$0xf]
  %v348 = vld [vmem:[%s8] sm:$0x1]
  %v350 = vlaneseq
  %v351 = vshrl.u32 %v350, 7
  %v352 = vsub.s32 0, %v351
  %v353 = vrot.slane %v348, %v352
  %v371 = vunpack.c.l.b16 %v332
  %v372 = vunpack.c.l.b16 %v333
  %v373 = vunpack.c.l.b16 %v334
  %v374 = vunpack.c.l.b16 %v335
  %v375 = vunpack.c.l.b16 %v336
  %v376 = vunpack.c.l.b16 %v337
  %v377 = vunpack.c.l.b16 %v338
  %v378 = vunpack.c.l.b16 %v339
  %v379 = vunpack.c.l.b16 %v340
  %v380 = vunpack.c.l.b16 %v341
  %v381 = vunpack.c.l.b16 %v342
  %v382 = vunpack.c.l.b16 %v343
  %v383 = vunpack.c.l.b16 %v344
  %v384 = vunpack.c.l.b16 %v345
  %v385 = vunpack.c.l.b16 %v346
  %v386 = vunpack.c.l.b16 %v347
  %v387 = vpack.c.b16 %v372, %v371
  %v388 = vpack.c.b16 %v374, %v373
  %v389 = vpack.c.b16 %v376, %v375
  %v390 = vpack.c.b16 %v378, %v377
  %v391 = vpack.c.b16 %v380, %v379
  %v392 = vpack.c.b16 %v382, %v381
  %v393 = vpack.c.b16 %v384, %v383
  %v394 = vpack.c.b16 %v386, %v385
  %403 = vmatprep.subr.bf16.mxu0 0
  %404 = vmatpush1.bf16.msra.mxu0 %v394
  %405 = vmatprep.subr.bf16.mxu0 0
  %406 = vmatpush1.bf16.msra.mxu0 %v393
  %407 = vmatprep.subr.bf16.mxu0 0
  %408 = vmatpush1.bf16.msra.mxu0 %v392
  %409 = vmatprep.subr.bf16.mxu0 0
  %410 = vmatpush1.bf16.msra.mxu0 %v391
  %411 = vmatprep.subr.bf16.mxu0 0
  %412 = vmatpush1.bf16.msra.mxu0 %v390
  %413 = vmatprep.subr.bf16.mxu0 0
  %414 = vmatpush1.bf16.msra.mxu0 %v389
  %415 = vmatprep.subr.bf16.mxu0 0
  %416 = vmatpush1.bf16.msra.mxu0 %v388
  %417 = vmatprep.subr.bf16.mxu0 0
  %418 = vmatpush1.bf16.msra.mxu0 %v387
  %419 = vmatprep.subr.bf16.mxu0 0
  %420 = vmatpush2.bf16.msra.mxu0 0
  %421 = vmatprep.subr.bf16.mxu0 0
  %422 = vmatpush2.bf16.msra.mxu0 0
  %423 = vmatprep.subr.bf16.mxu0 0
  %424 = vmatpush2.bf16.msra.mxu0 0
  %425 = vmatprep.subr.bf16.mxu0 0
  %426 = vmatpush2.bf16.msra.mxu0 0
  %427 = vmatprep.subr.bf16.mxu0 0
  %428 = vmatpush2.bf16.msra.mxu0 0
  %429 = vmatprep.subr.bf16.mxu0 0
  %430 = vmatpush2.bf16.msra.mxu0 0
  %431 = vmatprep.subr.bf16.mxu0 0
  %432 = vmatpush2.bf16.msra.mxu0 0
  %433 = vmatprep.subr.bf16.mxu0 0
  %434 = vmatpush2.bf16.msra.mxu0 0
  %435 = vmatprep.mubr.bf16.mxu0 0
  %436 = vmatmul.mubr.bf16.gmra.mxu0 %v331
  %v437 = vpop.f32.mrf.mxu0
  %v438 = vadd.f32 %v353, %v437
  %v439 = vpop.f32.mrf.mxu0
  %v440 = vpop.f32.mrf.mxu0
  %v441 = vadd.f32 %v353, %v440
  %v442 = vpop.f32.mrf.mxu0
  %443 = vdwg.mxu0
  %444 = vst.msk [vmem:[%s9] sm:$0xff] %vm71, %v438
  %445 = vst.msk [vmem:[%s9 + $0x8] sm:$0xff] %vm71, %v441
  // Predicated region
  $region38: #{forward_model_forward.1} parent=0 // pred_check
    _
  $region39: #{forward_model_forward.1} parent=0 // pred_check_branch
    %447 = sbr.rel (0) target = $region41
  $region40: #{forward_model_forward.1} parent=0 // pred_region
    _
  $region41: #{forward_model_forward.1} parent=0 // pred_fallthru
    _
  // Predicated region
  $region42: #{forward_model_forward.1} parent=0 // pred_check
    _
  $region43: #{forward_model_forward.1} parent=0 // pred_check_branch
    %449 = sbr.rel (0) target = $region45
  $region44: #{forward_model_forward.1} parent=0 // pred_region
    _
  $region45: #{forward_model_forward.1} parent=0 // pred_fallthru
    _

</llo_original>
